<compile_context>
chip_gen: v5e
topology: v5e:2x2
jax: 0.10.0
libtpu: 0.0.40
codegen_flags: <defaults>
</compile_context>

<pallas_src>
import functools
import math

import jax
import jax.numpy as jnp
from jax import lax
from jax.experimental import pallas as pl
from jax.experimental.pallas import tpu as pltpu

_LN_EPS = 1e-5
_LEAKY_SLOPE = 0.1
_LANE = 128


def _round_up(n, m):
    return ((n + m - 1) // m) * m


def _pad2(a, rows, cols):
    return jnp.pad(a, ((0, rows - a.shape[0]), (0, cols - a.shape[1])))


def _leaky_relu(x, slope=_LEAKY_SLOPE):
    return jnp.where(x >= 0, x, slope * x)


def _layer_norm(h, gamma, beta, eps=_LN_EPS):
    """Plain LayerNorm (used by the pure-JAX reference)."""
    mu = jnp.mean(h, axis=-1, keepdims=True)
    var = jnp.mean((h - mu) ** 2, axis=-1, keepdims=True)
    return (h - mu) * lax.rsqrt(var + eps) * gamma + beta


def _masked_layer_norm(h, gamma, beta, true_dim, eps=_LN_EPS):
    """LayerNorm over the first `true_dim` columns of a lane-padded activation.

    Columns >= true_dim are exactly zero (zero-padded weights/bias), so the sum
    over the padded width equals the sum over the true width. (h - mu) is
    re-masked so padded columns neither pollute the variance nor the output.
    """
    cols = lax.broadcasted_iota(jnp.int32, (1, h.shape[-1]), 1)
    col_mask = (cols < true_dim).astype(h.dtype)
    inv_n = 1.0 / float(true_dim)
    mu = jnp.sum(h, axis=-1, keepdims=True) * inv_n
    diff = (h - mu) * col_mask
    var = jnp.sum(diff * diff, axis=-1, keepdims=True) * inv_n
    return diff * lax.rsqrt(var + eps) * gamma + beta


# -----------------------------------------------------------------------------
# Fused kernel: encoder -> (decoder, classifier) on one (TM, ·) batch tile.
# Weights/biases/LN params are VMEM-resident across all grid steps.
# -----------------------------------------------------------------------------

def _fused_kernel(*refs, cfg):
    it = iter(refs)
    x_ref = next(it)
    mask_ref = next(it) if cfg["use_mask"] else None
    emb_ref = next(it) if cfg["dec_has_emb"] else None

    enc_w = next(it)
    enc_b = next(it)
    enc_g = next(it)
    enc_bt = next(it)

    if cfg["use_decoder"]:
        dec_wh = next(it)
        dec_b = next(it)
        dec_we = next(it) if cfg["dec_has_emb"] else None

    if cfg["use_classifier"]:
        cls_w1 = next(it)
        cls_b1 = next(it)
        cls_g = next(it)
        cls_bt = next(it)
        cls_w2 = next(it)
        cls_b2 = next(it)

    enc_out = next(it)
    dec_out = next(it) if cfg["use_decoder"] else None
    cls_out = next(it) if cfg["use_classifier"] else None

    mm = cfg["matmul_dtype"]
    hidden = cfg["hidden_dim"]

    # --- encoder: (x * sigmoid(mask)) @ W + b -> LayerNorm -> LeakyReLU(0.1) ----
    x = x_ref[...]                              # f32
    if mask_ref is not None:
        x = x * mask_ref[...]                   # f32 VPU multiply (v5e-friendly)
    h = jnp.dot(x.astype(mm), enc_w[...], preferred_element_type=jnp.float32)
    h = h + enc_b[...]
    encoded = _leaky_relu(_masked_layer_norm(h, enc_g[...], enc_bt[...], hidden))
    enc_out[...] = encoded.astype(enc_out.dtype)

    enc_mm = encoded.astype(mm)

    # --- decoder: encoded @ W_h + emb @ W_e + b (split matmul, no concat) -------
    if cfg["use_decoder"]:
        d = jnp.dot(enc_mm, dec_wh[...], preferred_element_type=jnp.float32)
        if dec_we is not None:
            d = d + jnp.dot(emb_ref[...].astype(mm), dec_we[...],
                            preferred_element_type=jnp.float32)
        dec_out[...] = (d + dec_b[...]).astype(dec_out.dtype)

    # --- classifier: Linear -> LayerNorm -> LeakyReLU -> Linear -----------------
    if cfg["use_classifier"]:
        c = jnp.dot(enc_mm, cls_w1[...], preferred_element_type=jnp.float32)
        c = c + cls_b1[...]
        c = _leaky_relu(_masked_layer_norm(c, cls_g[...], cls_bt[...], hidden))
        o = jnp.dot(c.astype(mm), cls_w2[...], preferred_element_type=jnp.float32)
        cls_out[...] = (o + cls_b2[...]).astype(cls_out.dtype)


# -----------------------------------------------------------------------------
# Model: deterministic parameter construction + forward (Pallas)
# -----------------------------------------------------------------------------

class ConcordModelPallas:
    def __init__(self, input_dim, hidden_dim, num_domains, num_classes,
                 domain_embedding_dim=8,
                 covariate_embedding_dims=None, covariate_num_categories=None,
                 use_decoder=True, use_classifier=True, use_importance_mask=True,
                 matmul_dtype=jnp.bfloat16, tile_m=256, seed=0):
        covariate_embedding_dims = covariate_embedding_dims or {}
        covariate_num_categories = covariate_num_categories or {}

        self.input_dim = input_dim
        self.hidden_dim = hidden_dim
        self.num_classes = num_classes
        self.domain_embedding_dim = domain_embedding_dim
        self.use_decoder = use_decoder
        self.use_classifier = use_classifier
        self.use_importance_mask = use_importance_mask
        self.matmul_dtype = matmul_dtype
        self.tile_m = tile_m

        key = jax.random.PRNGKey(seed)
        keys = iter(jax.random.split(key, 16))

        def kaiming(k, fan_in, fan_out):
            # kaiming_normal_ on a torch (out, in) weight; stored here as (in, out)
            std = (2.0 / fan_in) ** 0.5
            return jax.random.normal(k, (fan_in, fan_out), jnp.float32) * std

        p = {}
        # --- embeddings ---
        total_emb = 0
        if domain_embedding_dim > 0:
            p['domain_emb'] = jax.random.normal(
                next(keys), (num_domains, domain_embedding_dim), jnp.float32)
            total_emb += domain_embedding_dim
        self.covariate_keys = []
        for ck, dim in covariate_embedding_dims.items():
            if dim > 0:
                p[f'cov_emb_{ck}'] = jax.random.normal(
                    next(keys), (covariate_num_categories[ck], dim), jnp.float32)
                self.covariate_keys.append(ck)
                total_emb += dim
        self.total_embedding_dim = total_emb

        # --- encoder: Linear(input_dim, hidden) + LayerNorm + LeakyReLU(0.1) ---
        p['enc_w'] = kaiming(next(keys), input_dim, hidden_dim)
        p['enc_b'] = jnp.zeros((1, hidden_dim), jnp.float32)
        p['enc_ln_g'] = jnp.ones((1, hidden_dim), jnp.float32)
        p['enc_ln_b'] = jnp.zeros((1, hidden_dim), jnp.float32)

        # --- decoder: Linear(hidden + total_emb, input_dim) ---
        if use_decoder:
            dec_in = hidden_dim + total_emb
            p['dec_w'] = kaiming(next(keys), dec_in, input_dim)
            p['dec_b'] = jnp.zeros((1, input_dim), jnp.float32)

        # --- classifier: Linear + LN + LeakyReLU + Linear ---
        if use_classifier:
            p['cls_w1'] = kaiming(next(keys), hidden_dim, hidden_dim)
            p['cls_b1'] = jnp.zeros((1, hidden_dim), jnp.float32)
            p['cls_ln_g'] = jnp.ones((1, hidden_dim), jnp.float32)
            p['cls_ln_b'] = jnp.zeros((1, hidden_dim), jnp.float32)
            p['cls_w2'] = kaiming(next(keys), hidden_dim, num_classes)
            p['cls_b2'] = jnp.zeros((1, num_classes), jnp.float32)

        # --- importance mask (nn.Parameter(torch.ones(input_dim))) ---
        if use_importance_mask:
            p['imp_mask'] = jnp.ones((1, input_dim), jnp.float32)

        self.params = p

        # --- lane-padded, dtype-converted kernel copies of the parameters ------
        # Padding targets (lane-dense stores + full MXU N-dim utilisation).
        self.dpad = _round_up(input_dim, _LANE)
        self.hpad = _round_up(hidden_dim, _LANE)
        self.cpad = _round_up(num_classes, _LANE) if use_classifier else 0
        self.epad = _round_up(total_emb, _LANE) if total_emb > 0 else 0

        mm = matmul_dtype
        Dp, Hp, Cp, Ep = self.dpad, self.hpad, self.cpad, self.epad
        kp = {}
        kp['enc_w'] = _pad2(p['enc_w'], Dp, Hp).astype(mm)
        kp['enc_b'] = _pad2(p['enc_b'], 1, Hp)
        kp['enc_g'] = _pad2(p['enc_ln_g'], 1, Hp)
        kp['enc_bt'] = _pad2(p['enc_ln_b'], 1, Hp)
        if use_decoder:
            kp['dec_wh'] = _pad2(p['dec_w'][:hidden_dim], Hp, Dp).astype(mm)
            kp['dec_b'] = _pad2(p['dec_b'], 1, Dp)
            if total_emb > 0:
                kp['dec_we'] = _pad2(p['dec_w'][hidden_dim:], Ep, Dp).astype(mm)
        if use_classifier:
            kp['cls_w1'] = _pad2(p['cls_w1'], Hp, Hp).astype(mm)
            kp['cls_b1'] = _pad2(p['cls_b1'], 1, Hp)
            kp['cls_g'] = _pad2(p['cls_ln_g'], 1, Hp)
            kp['cls_bt'] = _pad2(p['cls_ln_b'], 1, Hp)
            kp['cls_w2'] = _pad2(p['cls_w2'], Hp, Cp).astype(mm)
            kp['cls_b2'] = _pad2(p['cls_b2'], 1, Cp)
        self.kernel_params = kp

    # ---- forward -------------------------------------------------------------
    def __call__(self, x, domain_labels=None, covariate_tensors=None):
        p, kp = self.params, self.kernel_params
        N = x.shape[0]
        Dp, Hp, Cp, Ep = self.dpad, self.hpad, self.cpad, self.epad

        # Embedding lookups (glue: plain-JAX gathers; tiny (N, emb_dim) tensors).
        embeddings = []
        if self.domain_embedding_dim > 0 and domain_labels is not None:
            embeddings.append(jnp.take(p['domain_emb'], domain_labels, axis=0))
        if covariate_tensors is not None:
            for ck, idx in covariate_tensors.items():
                if ck in self.covariate_keys:
                    embeddings.append(jnp.take(p[f'cov_emb_{ck}'], idx, axis=0))
        emb = jnp.concatenate(embeddings, axis=1) if embeddings else None

        if self.use_decoder and self.total_embedding_dim > 0:
            if emb is None or emb.shape[1] != self.total_embedding_dim:
                raise ValueError(
                    "decoder expects domain/covariate labels matching "
                    "total_embedding_dim (same constraint as the torch module)")
        dec_has_emb = self.use_decoder and emb is not None

        # Batch tiling: TM rows per grid step, pad N to a multiple of TM.
        tm = min(self.tile_m, _round_up(max(N, 1), 8))
        n_pad = _round_up(max(N, 1), tm)
        grid = (n_pad // tm,)

        xp = jnp.pad(x.astype(jnp.float32),
                     ((0, n_pad - N), (0, Dp - self.input_dim)))

        cfg = dict(use_mask=self.use_importance_mask,
                   use_decoder=self.use_decoder,
                   use_classifier=self.use_classifier,
                   dec_has_emb=dec_has_emb,
                   hidden_dim=self.hidden_dim,
                   matmul_dtype=self.matmul_dtype)

        def tile_spec(cols):
            return pl.BlockSpec((tm, cols), lambda i: (i, 0))

        def resident_spec(arr):
            return pl.BlockSpec(arr.shape, lambda i: (0, 0))

        inputs, in_specs = [xp], [tile_spec(Dp)]
        if self.use_importance_mask:
            # sigmoid hoisted out of the kernel: computed once per call, (1, Dp).
            mask_sig = _pad2(jax.nn.sigmoid(p['imp_mask']), 1, Dp)
            inputs.append(mask_sig)
            in_specs.append(resident_spec(mask_sig))
        if dec_has_emb:
            embp = jnp.pad(emb.astype(jnp.float32),
                           ((0, n_pad - N), (0, Ep - emb.shape[1])))
            inputs.append(embp)
            in_specs.append(tile_spec(Ep))

        resident_names = ['enc_w', 'enc_b', 'enc_g', 'enc_bt']
        if self.use_decoder:
            resident_names += ['dec_wh', 'dec_b'] + (['dec_we'] if dec_has_emb else [])
        if self.use_classifier:
            resident_names += ['cls_w1', 'cls_b1', 'cls_g', 'cls_bt', 'cls_w2', 'cls_b2']
        for name in resident_names:
            inputs.append(kp[name])
            in_specs.append(resident_spec(kp[name]))

        out_shapes = [jax.ShapeDtypeStruct((n_pad, Hp), jnp.float32)]
        out_specs = [tile_spec(Hp)]
        if self.use_decoder:
            out_shapes.append(jax.ShapeDtypeStruct((n_pad, Dp), jnp.float32))
            out_specs.append(tile_spec(Dp))
        if self.use_classifier:
            out_shapes.append(jax.ShapeDtypeStruct((n_pad, Cp), jnp.float32))
            out_specs.append(tile_spec(Cp))

        # Advisory cost estimate so XLA can overlap the kernel with the gathers.
        flops = 2 * n_pad * Dp * Hp
        if self.use_decoder:
            flops += 2 * n_pad * (Hp * Dp + (Ep * Dp if dec_has_emb else 0))
        if self.use_classifier:
            flops += 2 * n_pad * (Hp * Hp + Hp * Cp)
        bytes_accessed = sum(math.prod(a.shape) * a.dtype.itemsize for a in inputs)
        bytes_accessed += sum(math.prod(s.shape) * s.dtype.itemsize for s in out_shapes)
        cost = pl.CostEstimate(flops=int(flops), transcendentals=0,
                               bytes_accessed=int(bytes_accessed))

        fused = pl.pallas_call(
            functools.partial(_fused_kernel, cfg=cfg),
            grid=grid,
            in_specs=in_specs,
            out_specs=tuple(out_specs),
            out_shape=tuple(out_shapes),
            compiler_params=pltpu.CompilerParams(
                dimension_semantics=("parallel",)),
            cost_estimate=cost,
        )
        results = fused(*inputs)
        if not isinstance(results, (tuple, list)):
            results = (results,)

        out = {}
        idx = 0
        out['encoded'] = results[idx][:N, :self.hidden_dim]; idx += 1
        if self.use_decoder:
            out['decoded'] = results[idx][:N, :self.input_dim]; idx += 1
        if self.use_classifier:
            out['class_pred'] = results[idx][:N, :self.num_classes]; idx += 1
        return out

    # TODO(synk): norm_type='batch_norm', dropout_prob>0 (train mode) and deep
    #             encoder_dims/decoder_dims stacks are not implemented; the spec's
    #             default config (empty dims, layer_norm, eval) is what is exercised.


# -----------------------------------------------------------------------------
# Pure-JAX reference (same bf16-in / f32-accumulate matmul convention) for check
# -----------------------------------------------------------------------------

def _reference_forward(model, x, domain_labels, covariate_tensors):
    p = model.params
    mm = model.matmul_dtype

    def dot(a, b):
        return jnp.dot(a.astype(mm), b.astype(mm), preferred_element_type=jnp.float32)

    xm = x * jax.nn.sigmoid(p['imp_mask']) if model.use_importance_mask else x
    h = dot(xm, p['enc_w']) + p['enc_b']
    encoded = _leaky_relu(_layer_norm(h, p['enc_ln_g'], p['enc_ln_b']))
    out = {'encoded': encoded}

    embs = []
    if model.domain_embedding_dim > 0 and domain_labels is not None:
        embs.append(jnp.take(p['domain_emb'], domain_labels, axis=0))
    if covariate_tensors is not None:
        for ck, idx in covariate_tensors.items():
            if ck in model.covariate_keys:
                embs.append(jnp.take(p[f'cov_emb_{ck}'], idx, axis=0))

    if model.use_decoder:
        dec_in = jnp.concatenate([encoded] + embs, axis=1) if embs else encoded
        out['decoded'] = dot(dec_in, p['dec_w']) + p['dec_b']
    if model.use_classifier:
        c = dot(encoded, p['cls_w1']) + p['cls_b1']
        c = _leaky_relu(_layer_norm(c, p['cls_ln_g'], p['cls_ln_b']))
        out['class_pred'] = dot(c, p['cls_w2']) + p['cls_b2']
    return out


if __name__ == "__main__":
    N = 8              # batch
    INPUT_DIM = 32
    HIDDEN_DIM = 32
    NUM_DOMAINS = 4
    NUM_CLASSES = 16
    DOMAIN_EMB_DIM = 8
    COV_DIMS = {'batch': 8}
    COV_CATS = {'batch': 5}

    model = ConcordModelPallas(
        INPUT_DIM, HIDDEN_DIM, NUM_DOMAINS, NUM_CLASSES,
        domain_embedding_dim=DOMAIN_EMB_DIM,
        covariate_embedding_dims=COV_DIMS,
        covariate_num_categories=COV_CATS,
        use_decoder=True, use_classifier=True, use_importance_mask=True,
        matmul_dtype=jnp.bfloat16, seed=0)

    key = jax.random.PRNGKey(0)
    kx, kd, kc = jax.random.split(key, 3)
    x = jax.random.normal(kx, (N, INPUT_DIM), jnp.float32)
    domain_labels = jax.random.randint(kd, (N,), 0, NUM_DOMAINS, jnp.int32)
    cov_tensors = {'batch': jax.random.randint(kc, (N,), 0, COV_CATS['batch'], jnp.int32)}

    out = model(x, domain_labels, cov_tensors)
    out = jax.tree_util.tree_map(jax.block_until_ready, out)

    ref = _reference_forward(model, x, domain_labels, cov_tensors)
    for k in ('encoded', 'decoded', 'class_pred'):
        assert out[k].shape == ref[k].shape, f"shape mismatch in {k}"
        assert jnp.allclose(out[k], ref[k], atol=1e-2, rtol=1e-2), f"mismatch in {k}"

    print("KERNEL_OK")
</pallas_src>

<mosaic_0001>
module attributes {stable_mosaic.version = 11 : i64} {
  func.func @_fused_kernel(%arg0: i32, %arg1: memref<8x128xf32, #tpu.memory_space<vmem>>, %arg2: memref<1x128xf32, #tpu.memory_space<vmem>>, %arg3: memref<8x128xf32, #tpu.memory_space<vmem>>, %arg4: memref<128x128xbf16, #tpu.memory_space<vmem>>, %arg5: memref<1x128xf32, #tpu.memory_space<vmem>>, %arg6: memref<1x128xf32, #tpu.memory_space<vmem>>, %arg7: memref<1x128xf32, #tpu.memory_space<vmem>>, %arg8: memref<128x128xbf16, #tpu.memory_space<vmem>>, %arg9: memref<1x128xf32, #tpu.memory_space<vmem>>, %arg10: memref<128x128xbf16, #tpu.memory_space<vmem>>, %arg11: memref<128x128xbf16, #tpu.memory_space<vmem>>, %arg12: memref<1x128xf32, #tpu.memory_space<vmem>>, %arg13: memref<1x128xf32, #tpu.memory_space<vmem>>, %arg14: memref<1x128xf32, #tpu.memory_space<vmem>>, %arg15: memref<128x128xbf16, #tpu.memory_space<vmem>>, %arg16: memref<1x128xf32, #tpu.memory_space<vmem>>, %arg17: memref<8x128xf32, #tpu.memory_space<vmem>>, %arg18: memref<8x128xf32, #tpu.memory_space<vmem>>, %arg19: memref<8x128xf32, #tpu.memory_space<vmem>>) attributes {dimension_semantics = [#tpu.dimension_semantics<parallel>], iteration_bounds = array<i64: 1>, scalar_prefetch = 0 : i64, scratch_operands = 0 : i64, tpu.core_type = #tpu.core_type<tc>, window_params = [{transform_indices = @transform_0, window_bounds = array<i64: 8, 128>}, {pipeline_mode = #tpu.pipeline_mode<synchronous>, transform_indices = @transform_1, window_bounds = array<i64: 1, 128>}, {transform_indices = @transform_2, window_bounds = array<i64: 8, 128>}, {pipeline_mode = #tpu.pipeline_mode<synchronous>, transform_indices = @transform_3, window_bounds = array<i64: 128, 128>}, {pipeline_mode = #tpu.pipeline_mode<synchronous>, transform_indices = @transform_4, window_bounds = array<i64: 1, 128>}, {pipeline_mode = #tpu.pipeline_mode<synchronous>, transform_indices = @transform_5, window_bounds = array<i64: 1, 128>}, {pipeline_mode = #tpu.pipeline_mode<synchronous>, transform_indices = @transform_6, window_bounds = array<i64: 1, 128>}, {pipeline_mode = #tpu.pipeline_mode<synchronous>, transform_indices = @transform_7, window_bounds = array<i64: 128, 128>}, {pipeline_mode = #tpu.pipeline_mode<synchronous>, transform_indices = @transform_8, window_bounds = array<i64: 1, 128>}, {pipeline_mode = #tpu.pipeline_mode<synchronous>, transform_indices = @transform_9, window_bounds = array<i64: 128, 128>}, {pipeline_mode = #tpu.pipeline_mode<synchronous>, transform_indices = @transform_10, window_bounds = array<i64: 128, 128>}, {pipeline_mode = #tpu.pipeline_mode<synchronous>, transform_indices = @transform_11, window_bounds = array<i64: 1, 128>}, {pipeline_mode = #tpu.pipeline_mode<synchronous>, transform_indices = @transform_12, window_bounds = array<i64: 1, 128>}, {pipeline_mode = #tpu.pipeline_mode<synchronous>, transform_indices = @transform_13, window_bounds = array<i64: 1, 128>}, {pipeline_mode = #tpu.pipeline_mode<synchronous>, transform_indices = @transform_14, window_bounds = array<i64: 128, 128>}, {pipeline_mode = #tpu.pipeline_mode<synchronous>, transform_indices = @transform_15, window_bounds = array<i64: 1, 128>}, {transform_indices = @transform_16, window_bounds = array<i64: 8, 128>}, {transform_indices = @transform_17, window_bounds = array<i64: 8, 128>}, {transform_indices = @transform_18, window_bounds = array<i64: 8, 128>}]} {
    %c0 = arith.constant 0 : index
    %c0_0 = arith.constant 0 : index
    %0 = vector.load %arg1[%c0, %c0_0] : memref<8x128xf32, #tpu.memory_space<vmem>>, vector<8x128xf32>
    %c0_1 = arith.constant 0 : index
    %c0_2 = arith.constant 0 : index
    %1 = vector.load %arg2[%c0_1, %c0_2] : memref<1x128xf32, #tpu.memory_space<vmem>>, vector<1x128xf32>
    %2 = vector.broadcast %1 : vector<1x128xf32> to vector<8x128xf32>
    %3 = arith.mulf %0, %2 : vector<8x128xf32>
    %4 = arith.truncf %3 : vector<8x128xf32> to vector<8x128xbf16>
    %c0_3 = arith.constant 0 : index
    %c0_4 = arith.constant 0 : index
    %5 = vector.load %arg4[%c0_3, %c0_4] : memref<128x128xbf16, #tpu.memory_space<vmem>>, vector<128x128xbf16>
    %cst = arith.constant dense<0.000000e+00> : vector<8x128xf32>
    %6 = tpu.matmul %4, %5, %cst {dimension_numbers = #tpu.dot_dimension_numbers<[1], [0], [0], [1], [0, 0, 1, 1], [], []>} : vector<8x128xbf16>, vector<128x128xbf16>, vector<8x128xf32> -> vector<8x128xf32>
    %c0_5 = arith.constant 0 : index
    %c0_6 = arith.constant 0 : index
    %7 = vector.load %arg5[%c0_5, %c0_6] : memref<1x128xf32, #tpu.memory_space<vmem>>, vector<1x128xf32>
    %8 = vector.broadcast %7 : vector<1x128xf32> to vector<8x128xf32>
    %9 = arith.addf %6, %8 : vector<8x128xf32>
    %c0_7 = arith.constant 0 : index
    %c0_8 = arith.constant 0 : index
    %10 = vector.load %arg6[%c0_7, %c0_8] : memref<1x128xf32, #tpu.memory_space<vmem>>, vector<1x128xf32>
    %c0_9 = arith.constant 0 : index
    %c0_10 = arith.constant 0 : index
    %11 = vector.load %arg7[%c0_9, %c0_10] : memref<1x128xf32, #tpu.memory_space<vmem>>, vector<1x128xf32>
    %12 = tpu.iota {dimensions = array<i32: 1>} : vector<1x128xi32>
    %c32_i32 = arith.constant 32 : i32
    %13 = vector.broadcast %c32_i32 : i32 to vector<1x128xi32>
    %14 = arith.cmpi slt, %12, %13 : vector<1x128xi32>
    %15 = arith.extui %14 : vector<1x128xi1> to vector<1x128xi32>
    %16 = arith.sitofp %15 : vector<1x128xi32> to vector<1x128xf32>
    %cst_11 = arith.constant dense<0.000000e+00> : vector<8xf32>
    %17 = vector.multi_reduction <add>, %9, %cst_11 [1] : vector<8x128xf32> to vector<8xf32>
    %18 = vector.shape_cast %17 : vector<8xf32> to vector<8x1xf32>
    %cst_12 = arith.constant 3.125000e-02 : f32
    %19 = vector.broadcast %cst_12 : f32 to vector<8x1xf32>
    %20 = arith.mulf %18, %19 : vector<8x1xf32>
    %21 = vector.broadcast %20 : vector<8x1xf32> to vector<8x128xf32>
    %22 = arith.subf %9, %21 : vector<8x128xf32>
    %23 = vector.broadcast %16 : vector<1x128xf32> to vector<8x128xf32>
    %24 = arith.mulf %22, %23 : vector<8x128xf32>
    %25 = arith.mulf %24, %24 : vector<8x128xf32>
    %cst_13 = arith.constant dense<0.000000e+00> : vector<8xf32>
    %26 = vector.multi_reduction <add>, %25, %cst_13 [1] : vector<8x128xf32> to vector<8xf32>
    %27 = vector.shape_cast %26 : vector<8xf32> to vector<8x1xf32>
    %cst_14 = arith.constant 3.125000e-02 : f32
    %28 = vector.broadcast %cst_14 : f32 to vector<8x1xf32>
    %29 = arith.mulf %27, %28 : vector<8x1xf32>
    %cst_15 = arith.constant 9.99999974E-6 : f32
    %30 = vector.broadcast %cst_15 : f32 to vector<8x1xf32>
    %31 = arith.addf %29, %30 : vector<8x1xf32>
    %32 = math.rsqrt %31 : vector<8x1xf32>
    %33 = vector.broadcast %32 : vector<8x1xf32> to vector<8x128xf32>
    %34 = arith.mulf %24, %33 : vector<8x128xf32>
    %35 = vector.broadcast %10 : vector<1x128xf32> to vector<8x128xf32>
    %36 = arith.mulf %34, %35 : vector<8x128xf32>
    %37 = vector.broadcast %11 : vector<1x128xf32> to vector<8x128xf32>
    %38 = arith.addf %36, %37 : vector<8x128xf32>
    %cst_16 = arith.constant 0.000000e+00 : f32
    %39 = vector.broadcast %cst_16 : f32 to vector<8x128xf32>
    %40 = arith.cmpf oge, %38, %39 : vector<8x128xf32>
    %cst_17 = arith.constant 1.000000e-01 : f32
    %41 = vector.broadcast %cst_17 : f32 to vector<8x128xf32>
    %42 = arith.mulf %41, %38 : vector<8x128xf32>
    %43 = arith.select %40, %38, %42 : vector<8x128xi1>, vector<8x128xf32>
    %c0_18 = arith.constant 0 : index
    %c0_19 = arith.constant 0 : index
    %44 = vector.load %arg17[%c0_18, %c0_19] : memref<8x128xf32, #tpu.memory_space<vmem>>, vector<8x128xf32>
    tpu.vector_store %arg17[%c0_18, %c0_19], %43 {strides = array<i32>} : memref<8x128xf32, #tpu.memory_space<vmem>>, vector<8x128xf32>,
    %45 = arith.truncf %43 : vector<8x128xf32> to vector<8x128xbf16>
    %c0_20 = arith.constant 0 : index
    %c0_21 = arith.constant 0 : index
    %46 = vector.load %arg8[%c0_20, %c0_21] : memref<128x128xbf16, #tpu.memory_space<vmem>>, vector<128x128xbf16>
    %cst_22 = arith.constant dense<0.000000e+00> : vector<8x128xf32>
    %47 = tpu.matmul %45, %46, %cst_22 {dimension_numbers = #tpu.dot_dimension_numbers<[1], [0], [0], [1], [0, 0, 1, 1], [], []>} : vector<8x128xbf16>, vector<128x128xbf16>, vector<8x128xf32> -> vector<8x128xf32>
    %c0_23 = arith.constant 0 : index
    %c0_24 = arith.constant 0 : index
    %48 = vector.load %arg3[%c0_23, %c0_24] : memref<8x128xf32, #tpu.memory_space<vmem>>, vector<8x128xf32>
    %49 = arith.truncf %48 : vector<8x128xf32> to vector<8x128xbf16>
    %c0_25 = arith.constant 0 : index
    %c0_26 = arith.constant 0 : index
    %50 = vector.load %arg10[%c0_25, %c0_26] : memref<128x128xbf16, #tpu.memory_space<vmem>>, vector<128x128xbf16>
    %cst_27 = arith.constant dense<0.000000e+00> : vector<8x128xf32>
    %51 = tpu.matmul %49, %50, %cst_27 {dimension_numbers = #tpu.dot_dimension_numbers<[1], [0], [0], [1], [0, 0, 1, 1], [], []>} : vector<8x128xbf16>, vector<128x128xbf16>, vector<8x128xf32> -> vector<8x128xf32>
    %52 = arith.addf %47, %51 : vector<8x128xf32>
    %c0_28 = arith.constant 0 : index
    %c0_29 = arith.constant 0 : index
    %53 = vector.load %arg9[%c0_28, %c0_29] : memref<1x128xf32, #tpu.memory_space<vmem>>, vector<1x128xf32>
    %54 = vector.broadcast %53 : vector<1x128xf32> to vector<8x128xf32>
    %55 = arith.addf %52, %54 : vector<8x128xf32>
    %c0_30 = arith.constant 0 : index
    %c0_31 = arith.constant 0 : index
    %56 = vector.load %arg18[%c0_30, %c0_31] : memref<8x128xf32, #tpu.memory_space<vmem>>, vector<8x128xf32>
    tpu.vector_store %arg18[%c0_30, %c0_31], %55 {strides = array<i32>} : memref<8x128xf32, #tpu.memory_space<vmem>>, vector<8x128xf32>,
    %c0_32 = arith.constant 0 : index
    %c0_33 = arith.constant 0 : index
    %57 = vector.load %arg11[%c0_32, %c0_33] : memref<128x128xbf16, #tpu.memory_space<vmem>>, vector<128x128xbf16>
    %cst_34 = arith.constant dense<0.000000e+00> : vector<8x128xf32>
    %58 = tpu.matmul %45, %57, %cst_34 {dimension_numbers = #tpu.dot_dimension_numbers<[1], [0], [0], [1], [0, 0, 1, 1], [], []>} : vector<8x128xbf16>, vector<128x128xbf16>, vector<8x128xf32> -> vector<8x128xf32>
    %c0_35 = arith.constant 0 : index
    %c0_36 = arith.constant 0 : index
    %59 = vector.load %arg12[%c0_35, %c0_36] : memref<1x128xf32, #tpu.memory_space<vmem>>, vector<1x128xf32>
    %60 = vector.broadcast %59 : vector<1x128xf32> to vector<8x128xf32>
    %61 = arith.addf %58, %60 : vector<8x128xf32>
    %c0_37 = arith.constant 0 : index
    %c0_38 = arith.constant 0 : index
    %62 = vector.load %arg13[%c0_37, %c0_38] : memref<1x128xf32, #tpu.memory_space<vmem>>, vector<1x128xf32>
    %c0_39 = arith.constant 0 : index
    %c0_40 = arith.constant 0 : index
    %63 = vector.load %arg14[%c0_39, %c0_40] : memref<1x128xf32, #tpu.memory_space<vmem>>, vector<1x128xf32>
    %64 = tpu.iota {dimensions = array<i32: 1>} : vector<1x128xi32>
    %c32_i32_41 = arith.constant 32 : i32
    %65 = vector.broadcast %c32_i32_41 : i32 to vector<1x128xi32>
    %66 = arith.cmpi slt, %64, %65 : vector<1x128xi32>
    %67 = arith.extui %66 : vector<1x128xi1> to vector<1x128xi32>
    %68 = arith.sitofp %67 : vector<1x128xi32> to vector<1x128xf32>
    %cst_42 = arith.constant dense<0.000000e+00> : vector<8xf32>
    %69 = vector.multi_reduction <add>, %61, %cst_42 [1] : vector<8x128xf32> to vector<8xf32>
    %70 = vector.shape_cast %69 : vector<8xf32> to vector<8x1xf32>
    %cst_43 = arith.constant 3.125000e-02 : f32
    %71 = vector.broadcast %cst_43 : f32 to vector<8x1xf32>
    %72 = arith.mulf %70, %71 : vector<8x1xf32>
    %73 = vector.broadcast %72 : vector<8x1xf32> to vector<8x128xf32>
    %74 = arith.subf %61, %73 : vector<8x128xf32>
    %75 = vector.broadcast %68 : vector<1x128xf32> to vector<8x128xf32>
    %76 = arith.mulf %74, %75 : vector<8x128xf32>
    %77 = arith.mulf %76, %76 : vector<8x128xf32>
    %cst_44 = arith.constant dense<0.000000e+00> : vector<8xf32>
    %78 = vector.multi_reduction <add>, %77, %cst_44 [1] : vector<8x128xf32> to vector<8xf32>
    %79 = vector.shape_cast %78 : vector<8xf32> to vector<8x1xf32>
    %cst_45 = arith.constant 3.125000e-02 : f32
    %80 = vector.broadcast %cst_45 : f32 to vector<8x1xf32>
    %81 = arith.mulf %79, %80 : vector<8x1xf32>
    %cst_46 = arith.constant 9.99999974E-6 : f32
    %82 = vector.broadcast %cst_46 : f32 to vector<8x1xf32>
    %83 = arith.addf %81, %82 : vector<8x1xf32>
    %84 = math.rsqrt %83 : vector<8x1xf32>
    %85 = vector.broadcast %84 : vector<8x1xf32> to vector<8x128xf32>
    %86 = arith.mulf %76, %85 : vector<8x128xf32>
    %87 = vector.broadcast %62 : vector<1x128xf32> to vector<8x128xf32>
    %88 = arith.mulf %86, %87 : vector<8x128xf32>
    %89 = vector.broadcast %63 : vector<1x128xf32> to vector<8x128xf32>
    %90 = arith.addf %88, %89 : vector<8x128xf32>
    %cst_47 = arith.constant 0.000000e+00 : f32
    %91 = vector.broadcast %cst_47 : f32 to vector<8x128xf32>
    %92 = arith.cmpf oge, %90, %91 : vector<8x128xf32>
    %cst_48 = arith.constant 1.000000e-01 : f32
    %93 = vector.broadcast %cst_48 : f32 to vector<8x128xf32>
    %94 = arith.mulf %93, %90 : vector<8x128xf32>
    %95 = arith.select %92, %90, %94 : vector<8x128xi1>, vector<8x128xf32>
    %96 = arith.truncf %95 : vector<8x128xf32> to vector<8x128xbf16>
    %c0_49 = arith.constant 0 : index
    %c0_50 = arith.constant 0 : index
    %97 = vector.load %arg15[%c0_49, %c0_50] : memref<128x128xbf16, #tpu.memory_space<vmem>>, vector<128x128xbf16>
    %cst_51 = arith.constant dense<0.000000e+00> : vector<8x128xf32>
    %98 = tpu.matmul %96, %97, %cst_51 {dimension_numbers = #tpu.dot_dimension_numbers<[1], [0], [0], [1], [0, 0, 1, 1], [], []>} : vector<8x128xbf16>, vector<128x128xbf16>, vector<8x128xf32> -> vector<8x128xf32>
    %c0_52 = arith.constant 0 : index
    %c0_53 = arith.constant 0 : index
    %99 = vector.load %arg16[%c0_52, %c0_53] : memref<1x128xf32, #tpu.memory_space<vmem>>, vector<1x128xf32>
    %100 = vector.broadcast %99 : vector<1x128xf32> to vector<8x128xf32>
    %101 = arith.addf %98, %100 : vector<8x128xf32>
    %c0_54 = arith.constant 0 : index
    %c0_55 = arith.constant 0 : index
    %102 = vector.load %arg19[%c0_54, %c0_55] : memref<8x128xf32, #tpu.memory_space<vmem>>, vector<8x128xf32>
    tpu.vector_store %arg19[%c0_54, %c0_55], %101 {strides = array<i32>} : memref<8x128xf32, #tpu.memory_space<vmem>>, vector<8x128xf32>,
    return
  }
  func.func @transform_0(%arg0: i32) -> (i32, i32) {
    %c0_i32 = arith.constant 0 : i32
    %c0_i32_0 = arith.constant 0 : i32
    return %arg0, %c0_i32 : i32, i32
  }
  func.func @transform_1(%arg0: i32) -> (i32, i32) {
    %c0_i32 = arith.constant 0 : i32
    %c0_i32_0 = arith.constant 0 : i32
    %c0_i32_1 = arith.constant 0 : i32
    return %c0_i32, %c0_i32_0 : i32, i32
  }
  func.func @transform_2(%arg0: i32) -> (i32, i32) {
    %c0_i32 = arith.constant 0 : i32
    %c0_i32_0 = arith.constant 0 : i32
    return %arg0, %c0_i32 : i32, i32
  }
  func.func @transform_3(%arg0: i32) -> (i32, i32) {
    %c0_i32 = arith.constant 0 : i32
    %c0_i32_0 = arith.constant 0 : i32
    %c0_i32_1 = arith.constant 0 : i32
    return %c0_i32, %c0_i32_0 : i32, i32
  }
  func.func @transform_4(%arg0: i32) -> (i32, i32) {
    %c0_i32 = arith.constant 0 : i32
    %c0_i32_0 = arith.constant 0 : i32
    %c0_i32_1 = arith.constant 0 : i32
    return %c0_i32, %c0_i32_0 : i32, i32
  }
  func.func @transform_5(%arg0: i32) -> (i32, i32) {
    %c0_i32 = arith.constant 0 : i32
    %c0_i32_0 = arith.constant 0 : i32
    %c0_i32_1 = arith.constant 0 : i32
    return %c0_i32, %c0_i32_0 : i32, i32
  }
  func.func @transform_6(%arg0: i32) -> (i32, i32) {
    %c0_i32 = arith.constant 0 : i32
    %c0_i32_0 = arith.constant 0 : i32
    %c0_i32_1 = arith.constant 0 : i32
    return %c0_i32, %c0_i32_0 : i32, i32
  }
  func.func @transform_7(%arg0: i32) -> (i32, i32) {
    %c0_i32 = arith.constant 0 : i32
    %c0_i32_0 = arith.constant 0 : i32
    %c0_i32_1 = arith.constant 0 : i32
    return %c0_i32, %c0_i32_0 : i32, i32
  }
  func.func @transform_8(%arg0: i32) -> (i32, i32) {
    %c0_i32 = arith.constant 0 : i32
    %c0_i32_0 = arith.constant 0 : i32
    %c0_i32_1 = arith.constant 0 : i32
    return %c0_i32, %c0_i32_0 : i32, i32
  }
  func.func @transform_9(%arg0: i32) -> (i32, i32) {
    %c0_i32 = arith.constant 0 : i32
    %c0_i32_0 = arith.constant 0 : i32
    %c0_i32_1 = arith.constant 0 : i32
    return %c0_i32, %c0_i32_0 : i32, i32
  }
  func.func @transform_10(%arg0: i32) -> (i32, i32) {
    %c0_i32 = arith.constant 0 : i32
    %c0_i32_0 = arith.constant 0 : i32
    %c0_i32_1 = arith.constant 0 : i32
    return %c0_i32, %c0_i32_0 : i32, i32
  }
  func.func @transform_11(%arg0: i32) -> (i32, i32) {
    %c0_i32 = arith.constant 0 : i32
    %c0_i32_0 = arith.constant 0 : i32
    %c0_i32_1 = arith.constant 0 : i32
    return %c0_i32, %c0_i32_0 : i32, i32
  }
  func.func @transform_12(%arg0: i32) -> (i32, i32) {
    %c0_i32 = arith.constant 0 : i32
    %c0_i32_0 = arith.constant 0 : i32
    %c0_i32_1 = arith.constant 0 : i32
    return %c0_i32, %c0_i32_0 : i32, i32
  }
  func.func @transform_13(%arg0: i32) -> (i32, i32) {
    %c0_i32 = arith.constant 0 : i32
    %c0_i32_0 = arith.constant 0 : i32
    %c0_i32_1 = arith.constant 0 : i32
    return %c0_i32, %c0_i32_0 : i32, i32
  }
  func.func @transform_14(%arg0: i32) -> (i32, i32) {
    %c0_i32 = arith.constant 0 : i32
    %c0_i32_0 = arith.constant 0 : i32
    %c0_i32_1 = arith.constant 0 : i32
    return %c0_i32, %c0_i32_0 : i32, i32
  }
  func.func @transform_15(%arg0: i32) -> (i32, i32) {
    %c0_i32 = arith.constant 0 : i32
    %c0_i32_0 = arith.constant 0 : i32
    %c0_i32_1 = arith.constant 0 : i32
    return %c0_i32, %c0_i32_0 : i32, i32
  }
  func.func @transform_16(%arg0: i32) -> (i32, i32) {
    %c0_i32 = arith.constant 0 : i32
    %c0_i32_0 = arith.constant 0 : i32
    return %arg0, %c0_i32 : i32, i32
  }
  func.func @transform_17(%arg0: i32) -> (i32, i32) {
    %c0_i32 = arith.constant 0 : i32
    %c0_i32_0 = arith.constant 0 : i32
    return %arg0, %c0_i32 : i32, i32
  }
  func.func @transform_18(%arg0: i32) -> (i32, i32) {
    %c0_i32 = arith.constant 0 : i32
    %c0_i32_0 = arith.constant 0 : i32
    return %arg0, %c0_i32 : i32, i32
  }
}

</mosaic_0001>

<llo_original>
// kernel: tpu_custom_call.1
$region0: #{tpu_custom_call.1}
  #allocation0 [shape = 'u32[]', space=smem, size = 0x4, offset = 0x4, fixed_abs, tag = 'smem constant byte address 0x4 - core index']
  #allocation1 [shape = 'u32[72,128]{1,0:T(1,128)}', space=vmem, size = 0x9000, scoped, tag = 'internal scratch']
  %s0 = inlined_call_operand.hbm [shape: f32[8,128], index: 0, kind: input, shape index: {}]
  %s1 = inlined_call_operand.hbm [shape: f32[1,128], index: 1, kind: input, shape index: {}]
  %s2 = inlined_call_operand.hbm [shape: f32[8,128], index: 2, kind: input, shape index: {}]
  %s3 = inlined_call_operand.hbm [shape: bf16[128,128], index: 3, kind: input, shape index: {}]
  %s4 = inlined_call_operand.vmem [shape: f32[1,128], index: 4, kind: input, shape index: {}]
  %s5 = inlined_call_operand.vmem [shape: f32[1,128], index: 5, kind: input, shape index: {}]
  %s6 = inlined_call_operand.vmem [shape: f32[1,128], index: 6, kind: input, shape index: {}]
  %s7 = inlined_call_operand.hbm [shape: bf16[128,128], index: 7, kind: input, shape index: {}]
  %s8 = inlined_call_operand.vmem [shape: f32[1,128], index: 8, kind: input, shape index: {}]
  %s9 = inlined_call_operand.hbm [shape: bf16[128,128], index: 9, kind: input, shape index: {}]
  %s10 = inlined_call_operand.hbm [shape: bf16[128,128], index: 10, kind: input, shape index: {}]
  %s11 = inlined_call_operand.vmem [shape: f32[1,128], index: 11, kind: input, shape index: {}]
  %s12 = inlined_call_operand.vmem [shape: f32[1,128], index: 12, kind: input, shape index: {}]
  %s13 = inlined_call_operand.vmem [shape: f32[1,128], index: 13, kind: input, shape index: {}]
  %s14 = inlined_call_operand.hbm [shape: bf16[128,128], index: 14, kind: input, shape index: {}]
  %s15 = inlined_call_operand.vmem [shape: f32[1,128], index: 15, kind: input, shape index: {}]
  %s16 = inlined_call_operand.hbm [shape: f32[8,128], index: 16, kind: output, shape index: {0}]
  %s17 = inlined_call_operand.hbm [shape: f32[8,128], index: 17, kind: output, shape index: {1}]
  %s18 = inlined_call_operand.hbm [shape: f32[8,128], index: 18, kind: output, shape index: {2}]
  %19 = xla_tuple %s16, %s17, %s18
  %s20 = sld [smem:[#allocation0]]
  $region122: #{tpu_custom_call.1} parent=0
    _
  %s22 = ssub.s32 1, %s20
  %s23 = scalar_select 0, %s22, %s20
  $region1: #{tpu_custom_call.1} parent=0
    #allocation2 [shape = 'u8[4096]{0}', space=vmem, size = 0x1000, scoped, tag = 'input window, operand 0, single buffered']
    #allocation3 [shape = 's32[1]{0}', space=sflag, size = 0x4, scoped, tag = 'scoped memory for tpu_custom_call.1']
    #allocation4 [shape = 's32[1]{0}', space=sflag, size = 0x4, scoped, tag = 'scoped memory for tpu_custom_call.1']
    #allocation5 [shape = 'u8[512]{0}', space=vmem, size = 0x400, scoped, tag = 'input window, operand 1, single buffered']
    #allocation6 [shape = 's32[1]{0}', space=sflag, size = 0x4, scoped, tag = 'scoped memory for tpu_custom_call.1']
    #allocation7 [shape = 'u8[4096]{0}', space=vmem, size = 0x1000, scoped, tag = 'input window, operand 2, single buffered']
    #allocation8 [shape = 'u8[32768]{0}', space=vmem, size = 0x8000, scoped, tag = 'input window, operand 3, single buffered']
    #allocation9 [shape = 's32[1]{0}', space=sflag, size = 0x4, scoped, tag = 'scoped memory for tpu_custom_call.1']
    #allocation10 [shape = 'u8[32768]{0}', space=vmem, size = 0x8000, scoped, tag = 'input window, operand 7, single buffered']
    #allocation11 [shape = 'u8[32768]{0}', space=vmem, size = 0x8000, scoped, tag = 'input window, operand 9, single buffered']
    #allocation12 [shape = 's32[1]{0}', space=sflag, size = 0x4, scoped, tag = 'scoped memory for tpu_custom_call.1']
    #allocation13 [shape = 'u8[32768]{0}', space=vmem, size = 0x8000, scoped, tag = 'input window, operand 10, single buffered']
    #allocation14 [shape = 'u8[32768]{0}', space=vmem, size = 0x8000, scoped, tag = 'input window, operand 14, single buffered']
    #allocation15 [shape = 's32[1]{0}', space=sflag, size = 0x4, scoped, tag = 'scoped memory for tpu_custom_call.1']
    #allocation16 [shape = 'u8[4096]{0}', space=vmem, size = 0x1000, scoped, tag = 'output window, operand 0, single buffered']
    #allocation17 [shape = 'u8[4096]{0}', space=vmem, size = 0x1000, scoped, tag = 'output window, operand 1, single buffered']
    #allocation18 [shape = 's32[1]{0}', space=sflag, size = 0x4, scoped, tag = 'scoped memory for tpu_custom_call.1']
    #allocation19 [shape = 'u8[4096]{0}', space=vmem, size = 0x1000, scoped, tag = 'output window, operand 2, single buffered']
    %24 = vsyncpa [#allocation3], 0
    %25 = vsyncpa [#allocation6], 0
    %26 = vsyncpa [#allocation9], 0
    %27 = vsyncpa [#allocation12], 0
    %28 = vsyncpa [#allocation15], 0
    %29 = vsyncpa [#allocation4], 0
    %30 = vsyncpa [#allocation18], 0
    // Predicated region
    $region2: #{tpu_custom_call.1} parent=1 // pred_check
      _
    $region3: #{tpu_custom_call.1} parent=1 // pred_check_branch
      %32 = sbr.rel (0) target = $region5
    $region4: #{tpu_custom_call.1} parent=1 // pred_region
      %34 = vsyncadd [#allocation3], 0
      %s36 = sshll.u32 %s0, 4
      %s37 = int_to_ptr.hbm [resolvable:$true] %s36
      %s38 = sshll.u32 [#allocation2], 4
      %s39 = int_to_ptr.vmem [resolvable:$true] %s38
      %41 = dma.hbm_to_vmem [thread:$0]  %s37, 128, %s39, [#allocation3]
    $region5: #{tpu_custom_call.1} parent=1 // pred_fallthru
      _
    // Predicated region
    $region6: #{tpu_custom_call.1} parent=1 // pred_check
      _
    $region7: #{tpu_custom_call.1} parent=1 // pred_check_branch
      %43 = sbr.rel (0) target = $region9
    $region8: #{tpu_custom_call.1} parent=1 // pred_region
      %45 = vsyncadd [#allocation6], 0
      %s47 = sshll.u32 %s1, 4
      %s48 = int_to_ptr.hbm [resolvable:$true] %s47
      %s49 = sshll.u32 [#allocation5], 4
      %s50 = int_to_ptr.vmem [resolvable:$true] %s49
      %52 = dma.hbm_to_vmem [thread:$0]  %s48, 16, %s50, [#allocation6]
    $region9: #{tpu_custom_call.1} parent=1 // pred_fallthru
      _
    // Predicated region
    $region10: #{tpu_custom_call.1} parent=1 // pred_check
      _
    $region11: #{tpu_custom_call.1} parent=1 // pred_check_branch
      %54 = sbr.rel (0) target = $region13
    $region12: #{tpu_custom_call.1} parent=1 // pred_region
      %56 = vsyncadd [#allocation6], 0
      %s58 = sshll.u32 %s2, 4
      %s59 = int_to_ptr.hbm [resolvable:$true] %s58
      %s60 = sshll.u32 [#allocation7], 4
      %s61 = int_to_ptr.vmem [resolvable:$true] %s60
      %63 = dma.hbm_to_vmem [thread:$0]  %s59, 128, %s61, [#allocation6]
    $region13: #{tpu_custom_call.1} parent=1 // pred_fallthru
      _
    // Predicated region
    $region14: #{tpu_custom_call.1} parent=1 // pred_check
      _
    $region15: #{tpu_custom_call.1} parent=1 // pred_check_branch
      %65 = sbr.rel (0) target = $region17
    $region16: #{tpu_custom_call.1} parent=1 // pred_region
      %67 = vsyncadd [#allocation9], 0
      %s68 = sshll.u32 %s3, 4
      %s69 = int_to_ptr.hbm [resolvable:$true] %s68
      %s70 = sshll.u32 [#allocation8], 4
      %s71 = int_to_ptr.vmem [resolvable:$true] %s70
      %76 = dma.hbm_to_vmem [thread:$0]  %s69, 1024, %s71, [#allocation9], 64, 64, 4
    $region17: #{tpu_custom_call.1} parent=1 // pred_fallthru
      _
    // Predicated region
    $region18: #{tpu_custom_call.1} parent=1 // pred_check
      _
    $region19: #{tpu_custom_call.1} parent=1 // pred_check_branch
      %78 = sbr.rel (0) target = $region21
    $region20: #{tpu_custom_call.1} parent=1 // pred_region
      _
    $region21: #{tpu_custom_call.1} parent=1 // pred_fallthru
      _
    // Predicated region
    $region22: #{tpu_custom_call.1} parent=1 // pred_check
      _
    $region23: #{tpu_custom_call.1} parent=1 // pred_check_branch
      %80 = sbr.rel (0) target = $region25
    $region24: #{tpu_custom_call.1} parent=1 // pred_region
      _
    $region25: #{tpu_custom_call.1} parent=1 // pred_fallthru
      _
    // Predicated region
    $region26: #{tpu_custom_call.1} parent=1 // pred_check
      _
    $region27: #{tpu_custom_call.1} parent=1 // pred_check_branch
      %82 = sbr.rel (0) target = $region29
    $region28: #{tpu_custom_call.1} parent=1 // pred_region
      _
    $region29: #{tpu_custom_call.1} parent=1 // pred_fallthru
      _
    // Predicated region
    $region30: #{tpu_custom_call.1} parent=1 // pred_check
      _
    $region31: #{tpu_custom_call.1} parent=1 // pred_check_branch
      %84 = sbr.rel (0) target = $region33
    $region32: #{tpu_custom_call.1} parent=1 // pred_region
      %86 = vsyncadd [#allocation9], 0
      %s87 = sshll.u32 %s7, 4
      %s88 = int_to_ptr.hbm [resolvable:$true] %s87
      %s89 = sshll.u32 [#allocation10], 4
      %s90 = int_to_ptr.vmem [resolvable:$true] %s89
      %95 = dma.hbm_to_vmem [thread:$0]  %s88, 1024, %s90, [#allocation9], 64, 64, 4
    $region33: #{tpu_custom_call.1} parent=1 // pred_fallthru
      _
    // Predicated region
    $region34: #{tpu_custom_call.1} parent=1 // pred_check
      _
    $region35: #{tpu_custom_call.1} parent=1 // pred_check_branch
      %97 = sbr.rel (0) target = $region37
    $region36: #{tpu_custom_call.1} parent=1 // pred_region
      _
    $region37: #{tpu_custom_call.1} parent=1 // pred_fallthru
      _
    // Predicated region
    $region38: #{tpu_custom_call.1} parent=1 // pred_check
      _
    $region39: #{tpu_custom_call.1} parent=1 // pred_check_branch
      %99 = sbr.rel (0) target = $region41
    $region40: #{tpu_custom_call.1} parent=1 // pred_region
      %101 = vsyncadd [#allocation12], 0
      %s102 = sshll.u32 %s9, 4
      %s103 = int_to_ptr.hbm [resolvable:$true] %s102
      %s104 = sshll.u32 [#allocation11], 4
      %s105 = int_to_ptr.vmem [resolvable:$true] %s104
      %110 = dma.hbm_to_vmem [thread:$0]  %s103, 1024, %s105, [#allocation12], 64, 64, 4
    $region41: #{tpu_custom_call.1} parent=1 // pred_fallthru
      _
    // Predicated region
    $region42: #{tpu_custom_call.1} parent=1 // pred_check
      _
    $region43: #{tpu_custom_call.1} parent=1 // pred_check_branch
      %112 = sbr.rel (0) target = $region45
    $region44: #{tpu_custom_call.1} parent=1 // pred_region
      %114 = vsyncadd [#allocation12], 0
      %s115 = sshll.u32 %s10, 4
      %s116 = int_to_ptr.hbm [resolvable:$true] %s115
      %s117 = sshll.u32 [#allocation13], 4
      %s118 = int_to_ptr.vmem [resolvable:$true] %s117
      %123 = dma.hbm_to_vmem [thread:$0]  %s116, 1024, %s118, [#allocation12], 64, 64, 4
    $region45: #{tpu_custom_call.1} parent=1 // pred_fallthru
      _
    // Predicated region
    $region46: #{tpu_custom_call.1} parent=1 // pred_check
      _
    $region47: #{tpu_custom_call.1} parent=1 // pred_check_branch
      %125 = sbr.rel (0) target = $region49
    $region48: #{tpu_custom_call.1} parent=1 // pred_region
      _
    $region49: #{tpu_custom_call.1} parent=1 // pred_fallthru
      _
    // Predicated region
    $region50: #{tpu_custom_call.1} parent=1 // pred_check
      _
    $region51: #{tpu_custom_call.1} parent=1 // pred_check_branch
      %127 = sbr.rel (0) target = $region53
    $region52: #{tpu_custom_call.1} parent=1 // pred_region
      _
    $region53: #{tpu_custom_call.1} parent=1 // pred_fallthru
      _
    // Predicated region
    $region54: #{tpu_custom_call.1} parent=1 // pred_check
      _
    $region55: #{tpu_custom_call.1} parent=1 // pred_check_branch
      %129 = sbr.rel (0) target = $region57
    $region56: #{tpu_custom_call.1} parent=1 // pred_region
      _
    $region57: #{tpu_custom_call.1} parent=1 // pred_fallthru
      _
    // Predicated region
    $region58: #{tpu_custom_call.1} parent=1 // pred_check
      _
    $region59: #{tpu_custom_call.1} parent=1 // pred_check_branch
      %131 = sbr.rel (0) target = $region61
    $region60: #{tpu_custom_call.1} parent=1 // pred_region
      %133 = vsyncadd [#allocation15], 0
      %s134 = sshll.u32 %s14, 4
      %s135 = int_to_ptr.hbm [resolvable:$true] %s134
      %s136 = sshll.u32 [#allocation14], 4
      %s137 = int_to_ptr.vmem [resolvable:$true] %s136
      %142 = dma.hbm_to_vmem [thread:$0]  %s135, 1024, %s137, [#allocation15], 64, 64, 4
    $region61: #{tpu_custom_call.1} parent=1 // pred_fallthru
      _
    // Predicated region
    $region62: #{tpu_custom_call.1} parent=1 // pred_check
      _
    $region63: #{tpu_custom_call.1} parent=1 // pred_check_branch
      %144 = sbr.rel (0) target = $region65
    $region64: #{tpu_custom_call.1} parent=1 // pred_region
      _
    $region65: #{tpu_custom_call.1} parent=1 // pred_fallthru
      _
    // Predicated region
    $region66: #{tpu_custom_call.1} parent=1 // pred_check
      _
    $region67: #{tpu_custom_call.1} parent=1 // pred_check_branch
      %146 = sbr.rel (0) target = $region69
    $region68: #{tpu_custom_call.1} parent=1 // pred_region
      %148 = dma.done [#allocation3], 128
    $region69: #{tpu_custom_call.1} parent=1 // pred_fallthru
      _
    // Predicated region
    $region70: #{tpu_custom_call.1} parent=1 // pred_check
      _
    $region71: #{tpu_custom_call.1} parent=1 // pred_check_branch
      %150 = sbr.rel (0) target = $region73
    $region72: #{tpu_custom_call.1} parent=1 // pred_region
      %152 = dma.done [#allocation6], 16
    $region73: #{tpu_custom_call.1} parent=1 // pred_fallthru
      _
    // Predicated region
    $region74: #{tpu_custom_call.1} parent=1 // pred_check
      _
    $region75: #{tpu_custom_call.1} parent=1 // pred_check_branch
      %154 = sbr.rel (0) target = $region77
    $region76: #{tpu_custom_call.1} parent=1 // pred_region
      %156 = dma.done [#allocation6], 128
    $region77: #{tpu_custom_call.1} parent=1 // pred_fallthru
      _
    // Predicated region
    $region78: #{tpu_custom_call.1} parent=1 // pred_check
      _
    $region79: #{tpu_custom_call.1} parent=1 // pred_check_branch
      %158 = sbr.rel (0) target = $region81
    $region80: #{tpu_custom_call.1} parent=1 // pred_region
      %160 = dma.done [#allocation9], 1024
    $region81: #{tpu_custom_call.1} parent=1 // pred_fallthru
      _
    // Predicated region
    $region82: #{tpu_custom_call.1} parent=1 // pred_check
      _
    $region83: #{tpu_custom_call.1} parent=1 // pred_check_branch
      %162 = sbr.rel (0) target = $region85
    $region84: #{tpu_custom_call.1} parent=1 // pred_region
      %164 = dma.done [#allocation9], 1024
    $region85: #{tpu_custom_call.1} parent=1 // pred_fallthru
      _
    // Predicated region
    $region86: #{tpu_custom_call.1} parent=1 // pred_check
      _
    $region87: #{tpu_custom_call.1} parent=1 // pred_check_branch
      %166 = sbr.rel (0) target = $region89
    $region88: #{tpu_custom_call.1} parent=1 // pred_region
      %168 = dma.done [#allocation12], 1024
    $region89: #{tpu_custom_call.1} parent=1 // pred_fallthru
      _
    // Predicated region
    $region90: #{tpu_custom_call.1} parent=1 // pred_check
      _
    $region91: #{tpu_custom_call.1} parent=1 // pred_check_branch
      %170 = sbr.rel (0) target = $region93
    $region92: #{tpu_custom_call.1} parent=1 // pred_region
      %172 = dma.done [#allocation12], 1024
    $region93: #{tpu_custom_call.1} parent=1 // pred_fallthru
      _
    // Predicated region
    $region94: #{tpu_custom_call.1} parent=1 // pred_check
      _
    $region95: #{tpu_custom_call.1} parent=1 // pred_check_branch
      %174 = sbr.rel (0) target = $region97
    $region96: #{tpu_custom_call.1} parent=1 // pred_region
      %176 = dma.done [#allocation15], 1024
    $region97: #{tpu_custom_call.1} parent=1 // pred_fallthru
      _
    %v177 = vld [vmem:[#allocation2] sm:$0xff]
    %v178 = vld [vmem:[#allocation5] sm:$0x1]
    %v180 = vperm.slane %v178, 0
    %v182 = vmul.f32 %v177, %v180
    %v183 = vpack.c.bf16 %v182, %v182
    %v184 = vld [vmem:[#allocation8] sm:$0xf]
    %v185 = vld [vmem:[#allocation8 + $0x4] sm:$0xf]
    %v186 = vld [vmem:[#allocation8 + $0x8] sm:$0xf]
    %v187 = vld [vmem:[#allocation8 + $0xc] sm:$0xf]
    %v188 = vld [vmem:[#allocation8 + $0x10] sm:$0xf]
    %v189 = vld [vmem:[#allocation8 + $0x14] sm:$0xf]
    %v190 = vld [vmem:[#allocation8 + $0x18] sm:$0xf]
    %v191 = vld [vmem:[#allocation8 + $0x1c] sm:$0xf]
    %v192 = vld [vmem:[#allocation8 + $0x20] sm:$0xf]
    %v193 = vld [vmem:[#allocation8 + $0x24] sm:$0xf]
    %v194 = vld [vmem:[#allocation8 + $0x28] sm:$0xf]
    %v195 = vld [vmem:[#allocation8 + $0x2c] sm:$0xf]
    %v196 = vld [vmem:[#allocation8 + $0x30] sm:$0xf]
    %v197 = vld [vmem:[#allocation8 + $0x34] sm:$0xf]
    %v198 = vld [vmem:[#allocation8 + $0x38] sm:$0xf]
    %v199 = vld [vmem:[#allocation8 + $0x3c] sm:$0xf]
    %v200 = vld [vmem:[%s4] sm:$0x1]
    %v202 = vperm.slane %v200, 0
    %v220 = vunpack.c.l.b16 %v184
    %v221 = vunpack.c.l.b16 %v185
    %v222 = vunpack.c.l.b16 %v186
    %v223 = vunpack.c.l.b16 %v187
    %v224 = vunpack.c.l.b16 %v188
    %v225 = vunpack.c.l.b16 %v189
    %v226 = vunpack.c.l.b16 %v190
    %v227 = vunpack.c.l.b16 %v191
    %v228 = vunpack.c.l.b16 %v192
    %v229 = vunpack.c.l.b16 %v193
    %v230 = vunpack.c.l.b16 %v194
    %v231 = vunpack.c.l.b16 %v195
    %v232 = vunpack.c.l.b16 %v196
    %v233 = vunpack.c.l.b16 %v197
    %v234 = vunpack.c.l.b16 %v198
    %v235 = vunpack.c.l.b16 %v199
    %v236 = vpack.c.b16 %v221, %v220
    %v237 = vpack.c.b16 %v223, %v222
    %v238 = vpack.c.b16 %v225, %v224
    %v239 = vpack.c.b16 %v227, %v226
    %v240 = vpack.c.b16 %v229, %v228
    %v241 = vpack.c.b16 %v231, %v230
    %v242 = vpack.c.b16 %v233, %v232
    %v243 = vpack.c.b16 %v235, %v234
    %252 = vmatpush.bf16.msra.mxu0 %v243
    %253 = vmatpush.bf16.msra.mxu0 %v242
    %254 = vmatpush.bf16.msra.mxu0 %v241
    %255 = vmatpush.bf16.msra.mxu0 %v240
    %256 = vmatpush.bf16.msra.mxu0 %v239
    %257 = vmatpush.bf16.msra.mxu0 %v238
    %258 = vmatpush.bf16.msra.mxu0 %v237
    %259 = vmatpush.bf16.msra.mxu0 %v236
    %260 = vmatmul.bf16.gmra.mxu0 %v183
    %v261 = vpop.f32.mrf.mxu0
    %v262 = vadd.f32 %v202, %v261
    %v263 = vpop.f32.mrf.mxu0
    %264 = vdwg.mxu0
    %v265 = vld [vmem:[%s5] sm:$0x1]
    %v266 = vld [vmem:[%s6] sm:$0x1]
    %v267 = vlaneseq
    %v268 = vand.u32 %v267, 127
    %vm269 = vcmp.lt.s32.totalorder %v268, 32
    %v270 = vsel %vm269, 1, 0
    %v271 = vcvt.s32.f32 %v270
    %272 = vadd.xlane.f32.xlu0 %v262
    %v273 = vpop.xlane.xlu0 %272
    %v274 = vmul.f32 %v273, 0.03125
    %v275 = vsub.f32 %v262, %v274
    %v276 = vmul.f32 %v275, %v271
    %v277 = vmul.f32 %v276, %v276
    %278 = vadd.xlane.f32.xlu0 %v277
    %v279 = vpop.xlane.xlu0 %278
    %v280 = vmul.f32 %v279, 0.03125
    %v281 = vadd.f32 %v280, 1e-05
    %v282 = vrsqrt.pop %v281
    %v283 = vmul.f32 %v282, %v281
    %v284 = vmul.f32 %v283, %v282
    %v285 = vmul.f32 0.5, %v284
    %v286 = vsub.f32 1.5, %v285
    %v287 = vmul.f32 %v282, %v286
    %vm288 = vweird.f32 %v281
    %vm289 = vweird.f32 %v282
    %vm290 = vmor %vm288, %vm289
    %v291 = vsel %vm290, %v282, %v287
    %v292 = vmul.f32 %v276, %v291
    %v294 = vperm.slane %v265, 0
    %v296 = vmul.f32 %v292, %v294
    %v298 = vperm.slane %v266, 0
    %v300 = vadd.f32 %v296, %v298
    %vm301 = vcmp.ge.f32.partialorder %v300, 0.0
    %v302 = vmul.f32 %v300, 0.1
    %v303 = vsel %vm301, %v300, %v302
    %304 = vst [vmem:[#allocation16] sm:$0xff] %v303
    %v305 = vpack.c.bf16 %v303, %v303
    %v306 = vld [vmem:[#allocation10] sm:$0xf]
    %v307 = vld [vmem:[#allocation10 + $0x4] sm:$0xf]
    %v308 = vld [vmem:[#allocation10 + $0x8] sm:$0xf]
    %v309 = vld [vmem:[#allocation10 + $0xc] sm:$0xf]
    %v310 = vld [vmem:[#allocation10 + $0x10] sm:$0xf]
    %v311 = vld [vmem:[#allocation10 + $0x14] sm:$0xf]
    %v312 = vld [vmem:[#allocation10 + $0x18] sm:$0xf]
    %v313 = vld [vmem:[#allocation10 + $0x1c] sm:$0xf]
    %v314 = vld [vmem:[#allocation10 + $0x20] sm:$0xf]
    %v315 = vld [vmem:[#allocation10 + $0x24] sm:$0xf]
    %v316 = vld [vmem:[#allocation10 + $0x28] sm:$0xf]
    %v317 = vld [vmem:[#allocation10 + $0x2c] sm:$0xf]
    %v318 = vld [vmem:[#allocation10 + $0x30] sm:$0xf]
    %v319 = vld [vmem:[#allocation10 + $0x34] sm:$0xf]
    %v320 = vld [vmem:[#allocation10 + $0x38] sm:$0xf]
    %v321 = vld [vmem:[#allocation10 + $0x3c] sm:$0xf]
    %v322 = vld [vmem:[#allocation7] sm:$0xff]
    %v323 = vpack.c.bf16 %v322, %v322
    %v324 = vld [vmem:[#allocation11] sm:$0xf]
    %v325 = vld [vmem:[#allocation11 + $0x4] sm:$0xf]
    %v326 = vld [vmem:[#allocation11 + $0x8] sm:$0xf]
    %v327 = vld [vmem:[#allocation11 + $0xc] sm:$0xf]
    %v328 = vld [vmem:[#allocation11 + $0x10] sm:$0xf]
    %v329 = vld [vmem:[#allocation11 + $0x14] sm:$0xf]
    %v330 = vld [vmem:[#allocation11 + $0x18] sm:$0xf]
    %v331 = vld [vmem:[#allocation11 + $0x1c] sm:$0xf]
    %v332 = vld [vmem:[#allocation11 + $0x20] sm:$0xf]
    %v333 = vld [vmem:[#allocation11 + $0x24] sm:$0xf]
    %v334 = vld [vmem:[#allocation11 + $0x28] sm:$0xf]
    %v335 = vld [vmem:[#allocation11 + $0x2c] sm:$0xf]
    %v336 = vld [vmem:[#allocation11 + $0x30] sm:$0xf]
    %v337 = vld [vmem:[#allocation11 + $0x34] sm:$0xf]
    %v338 = vld [vmem:[#allocation11 + $0x38] sm:$0xf]
    %v339 = vld [vmem:[#allocation11 + $0x3c] sm:$0xf]
    %v356 = vunpack.c.l.b16 %v324
    %v357 = vunpack.c.l.b16 %v325
    %v358 = vunpack.c.l.b16 %v326
    %v359 = vunpack.c.l.b16 %v327
    %v360 = vunpack.c.l.b16 %v328
    %v361 = vunpack.c.l.b16 %v329
    %v362 = vunpack.c.l.b16 %v330
    %v363 = vunpack.c.l.b16 %v331
    %v364 = vunpack.c.l.b16 %v332
    %v365 = vunpack.c.l.b16 %v333
    %v366 = vunpack.c.l.b16 %v334
    %v367 = vunpack.c.l.b16 %v335
    %v368 = vunpack.c.l.b16 %v336
    %v369 = vunpack.c.l.b16 %v337
    %v370 = vunpack.c.l.b16 %v338
    %v371 = vunpack.c.l.b16 %v339
    %v372 = vpack.c.b16 %v357, %v356
    %v373 = vpack.c.b16 %v359, %v358
    %v374 = vpack.c.b16 %v361, %v360
    %v375 = vpack.c.b16 %v363, %v362
    %v376 = vpack.c.b16 %v365, %v364
    %v377 = vpack.c.b16 %v367, %v366
    %v378 = vpack.c.b16 %v369, %v368
    %v379 = vpack.c.b16 %v371, %v370
    %388 = vmatpush.bf16.msra.mxu0 %v379
    %389 = vmatpush.bf16.msra.mxu0 %v378
    %390 = vmatpush.bf16.msra.mxu0 %v377
    %391 = vmatpush.bf16.msra.mxu0 %v376
    %392 = vmatpush.bf16.msra.mxu0 %v375
    %393 = vmatpush.bf16.msra.mxu0 %v374
    %394 = vmatpush.bf16.msra.mxu0 %v373
    %395 = vmatpush.bf16.msra.mxu0 %v372
    %396 = vmatmul.bf16.gmra.mxu0 %v323
    %v397 = vpop.f32.mrf.mxu0
    %v398 = vadd.f32 0.0, %v397
    %v399 = vpop.f32.mrf.mxu0
    %400 = vdwg.mxu0
    %v417 = vunpack.c.l.b16 %v306
    %v418 = vunpack.c.l.b16 %v307
    %v419 = vunpack.c.l.b16 %v308
    %v420 = vunpack.c.l.b16 %v309
    %v421 = vunpack.c.l.b16 %v310
    %v422 = vunpack.c.l.b16 %v311
    %v423 = vunpack.c.l.b16 %v312
    %v424 = vunpack.c.l.b16 %v313
    %v425 = vunpack.c.l.b16 %v314
    %v426 = vunpack.c.l.b16 %v315
    %v427 = vunpack.c.l.b16 %v316
    %v428 = vunpack.c.l.b16 %v317
    %v429 = vunpack.c.l.b16 %v318
    %v430 = vunpack.c.l.b16 %v319
    %v431 = vunpack.c.l.b16 %v320
    %v432 = vunpack.c.l.b16 %v321
    %v433 = vpack.c.b16 %v418, %v417
    %v434 = vpack.c.b16 %v420, %v419
    %v435 = vpack.c.b16 %v422, %v421
    %v436 = vpack.c.b16 %v424, %v423
    %v437 = vpack.c.b16 %v426, %v425
    %v438 = vpack.c.b16 %v428, %v427
    %v439 = vpack.c.b16 %v430, %v429
    %v440 = vpack.c.b16 %v432, %v431
    %449 = vmatpush.bf16.msra.mxu0 %v440
    %450 = vmatpush.bf16.msra.mxu0 %v439
    %451 = vmatpush.bf16.msra.mxu0 %v438
    %452 = vmatpush.bf16.msra.mxu0 %v437
    %453 = vmatpush.bf16.msra.mxu0 %v436
    %454 = vmatpush.bf16.msra.mxu0 %v435
    %455 = vmatpush.bf16.msra.mxu0 %v434
    %456 = vmatpush.bf16.msra.mxu0 %v433
    %457 = vmatmul.bf16.gmra.mxu0 %v305
    %v458 = vpop.f32.mrf.mxu0
    %v459 = vadd.f32 %v398, %v458
    %v460 = vpop.f32.mrf.mxu0
    %461 = vdwg.mxu0
    %v462 = vld [vmem:[%s8] sm:$0x1]
    %v464 = vperm.slane %v462, 0
    %v466 = vadd.f32 %v459, %v464
    %467 = vst [vmem:[#allocation17] sm:$0xff] %v466
    %v468 = vld [vmem:[#allocation13] sm:$0xf]
    %v469 = vld [vmem:[#allocation13 + $0x4] sm:$0xf]
    %v470 = vld [vmem:[#allocation13 + $0x8] sm:$0xf]
    %v471 = vld [vmem:[#allocation13 + $0xc] sm:$0xf]
    %v472 = vld [vmem:[#allocation13 + $0x10] sm:$0xf]
    %v473 = vld [vmem:[#allocation13 + $0x14] sm:$0xf]
    %v474 = vld [vmem:[#allocation13 + $0x18] sm:$0xf]
    %v475 = vld [vmem:[#allocation13 + $0x1c] sm:$0xf]
    %v476 = vld [vmem:[#allocation13 + $0x20] sm:$0xf]
    %v477 = vld [vmem:[#allocation13 + $0x24] sm:$0xf]
    %v478 = vld [vmem:[#allocation13 + $0x28] sm:$0xf]
    %v479 = vld [vmem:[#allocation13 + $0x2c] sm:$0xf]
    %v480 = vld [vmem:[#allocation13 + $0x30] sm:$0xf]
    %v481 = vld [vmem:[#allocation13 + $0x34] sm:$0xf]
    %v482 = vld [vmem:[#allocation13 + $0x38] sm:$0xf]
    %v483 = vld [vmem:[#allocation13 + $0x3c] sm:$0xf]
    %v484 = vld [vmem:[%s11] sm:$0x1]
    %v486 = vperm.slane %v484, 0
    %v504 = vunpack.c.l.b16 %v468
    %v505 = vunpack.c.l.b16 %v469
    %v506 = vunpack.c.l.b16 %v470
    %v507 = vunpack.c.l.b16 %v471
    %v508 = vunpack.c.l.b16 %v472
    %v509 = vunpack.c.l.b16 %v473
    %v510 = vunpack.c.l.b16 %v474
    %v511 = vunpack.c.l.b16 %v475
    %v512 = vunpack.c.l.b16 %v476
    %v513 = vunpack.c.l.b16 %v477
    %v514 = vunpack.c.l.b16 %v478
    %v515 = vunpack.c.l.b16 %v479
    %v516 = vunpack.c.l.b16 %v480
    %v517 = vunpack.c.l.b16 %v481
    %v518 = vunpack.c.l.b16 %v482
    %v519 = vunpack.c.l.b16 %v483
    %v520 = vpack.c.b16 %v505, %v504
    %v521 = vpack.c.b16 %v507, %v506
    %v522 = vpack.c.b16 %v509, %v508
    %v523 = vpack.c.b16 %v511, %v510
    %v524 = vpack.c.b16 %v513, %v512
    %v525 = vpack.c.b16 %v515, %v514
    %v526 = vpack.c.b16 %v517, %v516
    %v527 = vpack.c.b16 %v519, %v518
    %536 = vmatpush.bf16.msra.mxu0 %v527
    %537 = vmatpush.bf16.msra.mxu0 %v526
    %538 = vmatpush.bf16.msra.mxu0 %v525
    %539 = vmatpush.bf16.msra.mxu0 %v524
    %540 = vmatpush.bf16.msra.mxu0 %v523
    %541 = vmatpush.bf16.msra.mxu0 %v522
    %542 = vmatpush.bf16.msra.mxu0 %v521
    %543 = vmatpush.bf16.msra.mxu0 %v520
    %544 = vmatmul.bf16.gmra.mxu0 %v305
    %v545 = vpop.f32.mrf.mxu0
    %v546 = vadd.f32 %v486, %v545
    %v547 = vpop.f32.mrf.mxu0
    %548 = vdwg.mxu0
    %v549 = vld [vmem:[%s12] sm:$0x1]
    %v550 = vld [vmem:[%s13] sm:$0x1]
    %551 = vadd.xlane.f32.xlu0 %v546
    %v552 = vpop.xlane.xlu0 %551
    %v553 = vmul.f32 %v552, 0.03125
    %v554 = vsub.f32 %v546, %v553
    %v555 = vmul.f32 %v554, %v271
    %v556 = vmul.f32 %v555, %v555
    %557 = vadd.xlane.f32.xlu0 %v556
    %v558 = vpop.xlane.xlu0 %557
    %v559 = vmul.f32 %v558, 0.03125
    %v560 = vadd.f32 %v559, 1e-05
    %v561 = vrsqrt.pop %v560
    %v562 = vmul.f32 %v561, %v560
    %v563 = vmul.f32 %v562, %v561
    %v564 = vmul.f32 0.5, %v563
    %v565 = vsub.f32 1.5, %v564
    %v566 = vmul.f32 %v561, %v565
    %vm567 = vweird.f32 %v560
    %vm568 = vweird.f32 %v561
    %vm569 = vmor %vm567, %vm568
    %v570 = vsel %vm569, %v561, %v566
    %v571 = vmul.f32 %v555, %v570
    %v573 = vperm.slane %v549, 0
    %v575 = vmul.f32 %v571, %v573
    %v577 = vperm.slane %v550, 0
    %v579 = vadd.f32 %v575, %v577
    %vm580 = vcmp.ge.f32.partialorder %v579, 0.0
    %v581 = vmul.f32 %v579, 0.1
    %v582 = vsel %vm580, %v579, %v581
    %v583 = vpack.c.bf16 %v582, %v582
    %v584 = vld [vmem:[#allocation14] sm:$0xf]
    %v585 = vld [vmem:[#allocation14 + $0x4] sm:$0xf]
    %v586 = vld [vmem:[#allocation14 + $0x8] sm:$0xf]
    %v587 = vld [vmem:[#allocation14 + $0xc] sm:$0xf]
    %v588 = vld [vmem:[#allocation14 + $0x10] sm:$0xf]
    %v589 = vld [vmem:[#allocation14 + $0x14] sm:$0xf]
    %v590 = vld [vmem:[#allocation14 + $0x18] sm:$0xf]
    %v591 = vld [vmem:[#allocation14 + $0x1c] sm:$0xf]
    %v592 = vld [vmem:[#allocation14 + $0x20] sm:$0xf]
    %v593 = vld [vmem:[#allocation14 + $0x24] sm:$0xf]
    %v594 = vld [vmem:[#allocation14 + $0x28] sm:$0xf]
    %v595 = vld [vmem:[#allocation14 + $0x2c] sm:$0xf]
    %v596 = vld [vmem:[#allocation14 + $0x30] sm:$0xf]
    %v597 = vld [vmem:[#allocation14 + $0x34] sm:$0xf]
    %v598 = vld [vmem:[#allocation14 + $0x38] sm:$0xf]
    %v599 = vld [vmem:[#allocation14 + $0x3c] sm:$0xf]
    %v600 = vld [vmem:[%s15] sm:$0x1]
    %v602 = vperm.slane %v600, 0
    %v620 = vunpack.c.l.b16 %v584
    %v621 = vunpack.c.l.b16 %v585
    %v622 = vunpack.c.l.b16 %v586
    %v623 = vunpack.c.l.b16 %v587
    %v624 = vunpack.c.l.b16 %v588
    %v625 = vunpack.c.l.b16 %v589
    %v626 = vunpack.c.l.b16 %v590
    %v627 = vunpack.c.l.b16 %v591
    %v628 = vunpack.c.l.b16 %v592
    %v629 = vunpack.c.l.b16 %v593
    %v630 = vunpack.c.l.b16 %v594
    %v631 = vunpack.c.l.b16 %v595
    %v632 = vunpack.c.l.b16 %v596
    %v633 = vunpack.c.l.b16 %v597
    %v634 = vunpack.c.l.b16 %v598
    %v635 = vunpack.c.l.b16 %v599
    %v636 = vpack.c.b16 %v621, %v620
    %v637 = vpack.c.b16 %v623, %v622
    %v638 = vpack.c.b16 %v625, %v624
    %v639 = vpack.c.b16 %v627, %v626
    %v640 = vpack.c.b16 %v629, %v628
    %v641 = vpack.c.b16 %v631, %v630
    %v642 = vpack.c.b16 %v633, %v632
    %v643 = vpack.c.b16 %v635, %v634
    %652 = vmatpush.bf16.msra.mxu0 %v643
    %653 = vmatpush.bf16.msra.mxu0 %v642
    %654 = vmatpush.bf16.msra.mxu0 %v641
    %655 = vmatpush.bf16.msra.mxu0 %v640
    %656 = vmatpush.bf16.msra.mxu0 %v639
    %657 = vmatpush.bf16.msra.mxu0 %v638
    %658 = vmatpush.bf16.msra.mxu0 %v637
    %659 = vmatpush.bf16.msra.mxu0 %v636
    %660 = vmatmul.bf16.gmra.mxu0 %v583
    %v661 = vpop.f32.mrf.mxu0
    %v662 = vadd.f32 %v602, %v661
    %v663 = vpop.f32.mrf.mxu0
    %664 = vdwg.mxu0
    %665 = vst [vmem:[#allocation19] sm:$0xff] %v662
    // Predicated region
    $region98: #{tpu_custom_call.1} parent=1 // pred_check
      _
    $region99: #{tpu_custom_call.1} parent=1 // pred_check_branch
      %667 = sbr.rel (0) target = $region101
    $region100: #{tpu_custom_call.1} parent=1 // pred_region
      %669 = vsyncadd [#allocation4], 0
      %s671 = sshll.u32 [#allocation16], 4
      %s672 = int_to_ptr.vmem [resolvable:$true] %s671
      %s673 = sshll.u32 %s16, 4
      %s674 = int_to_ptr.hbm [resolvable:$true] %s673
      %676 = dma.vmem_to_hbm [thread:$0]  %s672, 128, %s674, [#allocation4]
    $region101: #{tpu_custom_call.1} parent=1 // pred_fallthru
      _
    // Predicated region
    $region102: #{tpu_custom_call.1} parent=1 // pred_check
      _
    $region103: #{tpu_custom_call.1} parent=1 // pred_check_branch
      %678 = sbr.rel (0) target = $region105
    $region104: #{tpu_custom_call.1} parent=1 // pred_region
      %680 = vsyncadd [#allocation18], 0
      %s682 = sshll.u32 [#allocation17], 4
      %s683 = int_to_ptr.vmem [resolvable:$true] %s682
      %s684 = sshll.u32 %s17, 4
      %s685 = int_to_ptr.hbm [resolvable:$true] %s684
      %687 = dma.vmem_to_hbm [thread:$0]  %s683, 128, %s685, [#allocation18]
    $region105: #{tpu_custom_call.1} parent=1 // pred_fallthru
      _
    // Predicated region
    $region106: #{tpu_custom_call.1} parent=1 // pred_check
      _
    $region107: #{tpu_custom_call.1} parent=1 // pred_check_branch
      %689 = sbr.rel (0) target = $region109
    $region108: #{tpu_custom_call.1} parent=1 // pred_region
      %691 = vsyncadd [#allocation18], 0
      %s693 = sshll.u32 [#allocation19], 4
      %s694 = int_to_ptr.vmem [resolvable:$true] %s693
      %s695 = sshll.u32 %s18, 4
      %s696 = int_to_ptr.hbm [resolvable:$true] %s695
      %698 = dma.vmem_to_hbm [thread:$0]  %s694, 128, %s696, [#allocation18]
    $region109: #{tpu_custom_call.1} parent=1 // pred_fallthru
      _
    // Predicated region
    $region110: #{tpu_custom_call.1} parent=1 // pred_check
      _
    $region111: #{tpu_custom_call.1} parent=1 // pred_check_branch
      %700 = sbr.rel (0) target = $region113
    $region112: #{tpu_custom_call.1} parent=1 // pred_region
      %702 = dma.done [#allocation4], 128
    $region113: #{tpu_custom_call.1} parent=1 // pred_fallthru
      _
    // Predicated region
    $region114: #{tpu_custom_call.1} parent=1 // pred_check
      _
    $region115: #{tpu_custom_call.1} parent=1 // pred_check_branch
      %704 = sbr.rel (0) target = $region117
    $region116: #{tpu_custom_call.1} parent=1 // pred_region
      %706 = dma.done [#allocation18], 128
    $region117: #{tpu_custom_call.1} parent=1 // pred_fallthru
      _
    // Predicated region
    $region118: #{tpu_custom_call.1} parent=1 // pred_check
      _
    $region119: #{tpu_custom_call.1} parent=1 // pred_check_branch
      %708 = sbr.rel (0) target = $region121
    $region120: #{tpu_custom_call.1} parent=1 // pred_region
      %710 = dma.done [#allocation18], 128
    $region121: #{tpu_custom_call.1} parent=1 // pred_fallthru
      _
    %711 = vsyncpa [#allocation3], 1
    %712 = vsyncpa [#allocation6], 1
    %713 = vsyncpa [#allocation9], 1
    %714 = vsyncpa [#allocation12], 1
    %715 = vsyncpa [#allocation15], 1
    %716 = vsyncpa [#allocation4], 1
    %717 = vsyncpa [#allocation18], 1

</llo_original>
